<compile_context>
chip_gen: v7x
topology: tpu7x:2x2x1
jax: 0.10.0
libtpu: 0.0.40
codegen_flags: <defaults>
</compile_context>

<pallas_src>
import functools

import jax
import jax.numpy as jnp
from jax import lax
from jax.experimental import pallas as pl
from jax.experimental.pallas import tpu as pltpu


def _round_up(x, m):
    return (x + m - 1) // m * m


def _conv1d_kernel(x_ref, w_ref, b_ref, o_ref, *, kernel_size, dilation, tile_l):
    # x_ref: (1, L_in_needed, C_in)  full padded sequence for this batch row
    # w_ref: (K, C_in, C_out)        grid-invariant
    # b_ref: (1, C_out)              f32, grid-invariant
    # o_ref: (1, tile_l, C_out)
    j = pl.program_id(1)
    base = pl.multiple_of(j * tile_l, 8)
    c_out = o_ref.shape[2]
    acc = jnp.zeros((tile_l, c_out), jnp.float32)
    for k in range(kernel_size):                      # K is small and static
        xs = x_ref[0, pl.ds(base + k * dilation, tile_l), :]
        acc = acc + jnp.dot(xs, w_ref[k], preferred_element_type=jnp.float32)
    acc = acc + b_ref[...]
    o_ref[0] = acc.astype(o_ref.dtype)


def conv_norm_pallas(signal, weight, bias=None, *, stride=1, padding=None,
                     dilation=1, tile_l=256):
    """PyTorch ConvNorm.forward == nn.Conv1d(signal).

    signal: [B, C_in, L]   weight: [C_out, C_in, K]   bias: [C_out] or None
    returns: [B, C_out, L_out]
    """
    if padding is None:
        padding = 0
    B, C_in, L = signal.shape
    C_out, C_in_w, K = weight.shape
    assert C_in == C_in_w, (C_in, C_in_w)

    L_pad = L + 2 * padding
    recept = dilation * (K - 1) + 1
    assert L_pad >= recept, "signal too short for this kernel/dilation/padding"
    L_out1 = L_pad - recept + 1                   # stride-1 output length
    L_out = (L_pad - recept) // stride + 1        # true output length

    # Token tile: multiple of the dtype sublane pack (8 f32 / 16 bf16 / 32 int8).
    sub = {4: 8, 2: 16, 1: 32}.get(jnp.dtype(signal.dtype).itemsize, 8)
    tl = max(sub, min(_round_up(tile_l, sub), _round_up(L_out1, sub)))
    num_tiles = pl.cdiv(L_out1, tl)
    L_out1_pad = num_tiles * tl
    L_in_needed = L_out1_pad + dilation * (K - 1)

    # Token-major layout (channels on lanes); zero-pad = conv padding + tile pad.
    x = jnp.transpose(signal, (0, 2, 1))                                   # [B, L, C_in]
    x = jnp.pad(x, ((0, 0), (padding, L_in_needed - L - padding), (0, 0)))
    w = jnp.transpose(weight, (2, 1, 0))                                   # [K, C_in, C_out]
    if bias is None:
        bias = jnp.zeros((C_out,), jnp.float32)
    b2 = bias.reshape(1, C_out).astype(jnp.float32)      # pre-cast once (wrapper)

    kernel = functools.partial(_conv1d_kernel, kernel_size=K,
                               dilation=dilation, tile_l=tl)

    out1 = pl.pallas_call(
        kernel,
        out_shape=jax.ShapeDtypeStruct((B, L_out1_pad, C_out), signal.dtype),
        grid_spec=pltpu.PrefetchScalarGridSpec(
            num_scalar_prefetch=0,
            grid=(B, num_tiles),
            in_specs=[
                # whole padded sequence for batch b (block index constant in j
                # -> not re-fetched across position tiles)
                pl.BlockSpec((1, L_in_needed, C_in), lambda b, j: (b, 0, 0)),
                pl.BlockSpec((K, C_in, C_out), lambda b, j: (0, 0, 0)),
                pl.BlockSpec((1, C_out), lambda b, j: (0, 0)),
            ],
            out_specs=pl.BlockSpec((1, tl, C_out), lambda b, j: (b, j, 0)),
        ),
        compiler_params=pltpu.CompilerParams(
            dimension_semantics=("parallel", "parallel")),
    )(x, w, b2)

    out1 = out1[:, :L_out1, :]
    if stride > 1:
        # TODO(synk): stride>1 is computed as the stride-1 conv then subsampled
        # (semantically exact, but does stride-x extra MXU work).
        out1 = out1[:, ::stride, :]
    return jnp.transpose(out1, (0, 2, 1))                                  # [B, C_out, L_out]


def _conv1d_ref(signal, weight, bias, *, stride, padding, dilation):
    out = lax.conv_general_dilated(
        signal, weight, window_strides=(stride,),
        padding=[(padding, padding)], rhs_dilation=(dilation,),
        dimension_numbers=("NCH", "OIH", "NCH"))
    return out + bias[None, :, None]


def _glorot_uniform_conv(key, c_out, c_in, k, dtype=jnp.float32):
    # matches torch.nn.init.xavier_uniform_ on a (c_out, c_in, k) conv weight
    fan_in, fan_out = c_in * k, c_out * k
    limit = (6.0 / (fan_in + fan_out)) ** 0.5
    return jax.random.uniform(key, (c_out, c_in, k), dtype, -limit, limit)


if __name__ == "__main__":
    key = jax.random.PRNGKey(0)
    batch, c_in, length = 2, 16, 16

    configs = [
        dict(c_out=32, kernel_size=1, stride=1, padding=0, dilation=1),  # ConvNorm defaults
        dict(c_out=32, kernel_size=3, stride=1, padding=1, dilation=1),  # typical usage
        dict(c_out=24, kernel_size=3, stride=2, padding=2, dilation=2),  # strided / dilated
    ]

    for i, cfg in enumerate(configs):
        k_x, k_w, key = jax.random.split(key, 3)
        x = jax.random.normal(k_x, (batch, c_in, length), jnp.float32)
        w = _glorot_uniform_conv(k_w, cfg["c_out"], c_in, cfg["kernel_size"])
        b = jnp.zeros((cfg["c_out"],), jnp.float32)   # bias_initializer='zeros'

        out = conv_norm_pallas(x, w, b, stride=cfg["stride"],
                               padding=cfg["padding"], dilation=cfg["dilation"])
        jax.block_until_ready(out)

        ref = _conv1d_ref(x, w, b, stride=cfg["stride"],
                          padding=cfg["padding"], dilation=cfg["dilation"])
        assert out.shape == ref.shape, (i, out.shape, ref.shape)
        err = float(jnp.max(jnp.abs(out - ref)))
        assert jnp.allclose(out, ref, atol=2e-2, rtol=2e-2), \
            f"config {i} mismatch, max abs err {err}"

    print("KERNEL_OK")
</pallas_src>

<mosaic_0001>
module attributes {stable_mosaic.version = 11 : i64} {
  func.func @_conv1d_kernel(%arg0: i32, %arg1: i32, %arg2: memref<1x16x16xf32, #tpu.memory_space<vmem>>, %arg3: memref<1x16x32xf32, #tpu.memory_space<vmem>>, %arg4: memref<1x32xf32, #tpu.memory_space<vmem>>, %arg5: memref<1x16x32xf32, #tpu.memory_space<vmem>>) attributes {dimension_semantics = [#tpu.dimension_semantics<parallel>, #tpu.dimension_semantics<parallel>], iteration_bounds = array<i64: 2, 1>, scalar_prefetch = 0 : i64, scratch_operands = 0 : i64, tpu.core_type = #tpu.core_type<tc>, window_params = [{transform_indices = @transform_0, window_bounds = array<i64: 1, 16, 16>}, {pipeline_mode = #tpu.pipeline_mode<synchronous>, transform_indices = @transform_1, window_bounds = array<i64: 1, 16, 32>}, {pipeline_mode = #tpu.pipeline_mode<synchronous>, transform_indices = @transform_2, window_bounds = array<i64: 1, 32>}, {transform_indices = @transform_3, window_bounds = array<i64: 1, 16, 32>}]} {
    %c16_i32 = arith.constant 16 : i32
    %0 = arith.muli %arg1, %c16_i32 : i32
    %1 = tpu.assume_multiple %0, 8 : i32
    %cst = arith.constant 0.000000e+00 : f32
    %2 = vector.broadcast %cst : f32 to vector<16x32xf32>
    %c0_i32 = arith.constant 0 : i32
    %3 = arith.addi %1, %c0_i32 : i32
    %c0 = arith.constant 0 : index
    %4 = arith.index_cast %3 : i32 to index
    %c0_0 = arith.constant 0 : index
    %5 = vector.load %arg2[%c0, %4, %c0_0] : memref<1x16x16xf32, #tpu.memory_space<vmem>>, vector<1x16x16xf32>
    %6 = vector.shape_cast %5 : vector<1x16x16xf32> to vector<16x16xf32>
    %c0_1 = arith.constant 0 : index
    %c0_2 = arith.constant 0 : index
    %c0_3 = arith.constant 0 : index
    %7 = vector.load %arg3[%c0_1, %c0_2, %c0_3] : memref<1x16x32xf32, #tpu.memory_space<vmem>>, vector<1x16x32xf32>
    %8 = vector.shape_cast %7 : vector<1x16x32xf32> to vector<16x32xf32>
    %cst_4 = arith.constant dense<0.000000e+00> : vector<16x32xf32>
    %9 = tpu.matmul %6, %8, %cst_4 {dimension_numbers = #tpu.dot_dimension_numbers<[1], [0], [0], [1], [0, 0, 1, 1], [], []>} : vector<16x16xf32>, vector<16x32xf32>, vector<16x32xf32> -> vector<16x32xf32>
    %10 = arith.addf %2, %9 : vector<16x32xf32>
    %c0_5 = arith.constant 0 : index
    %c0_6 = arith.constant 0 : index
    %11 = vector.load %arg4[%c0_5, %c0_6] : memref<1x32xf32, #tpu.memory_space<vmem>>, vector<1x32xf32>
    %12 = vector.broadcast %11 : vector<1x32xf32> to vector<16x32xf32>
    %13 = arith.addf %10, %12 : vector<16x32xf32>
    %c0_7 = arith.constant 0 : index
    %c0_8 = arith.constant 0 : index
    %c0_9 = arith.constant 0 : index
    %14 = vector.load %arg5[%c0_7, %c0_8, %c0_9] : memref<1x16x32xf32, #tpu.memory_space<vmem>>, vector<1x16x32xf32>
    %15 = vector.shape_cast %14 : vector<1x16x32xf32> to vector<16x32xf32>
    %16 = vector.shape_cast %13 : vector<16x32xf32> to vector<1x16x32xf32>
    tpu.vector_store %arg5[%c0_7, %c0_8, %c0_9], %16 {strides = array<i32>} : memref<1x16x32xf32, #tpu.memory_space<vmem>>, vector<1x16x32xf32>,
    return
  }
  func.func @transform_0(%arg0: i32, %arg1: i32) -> (i32, i32, i32) {
    %c0_i32 = arith.constant 0 : i32
    %c0_i32_0 = arith.constant 0 : i32
    %c0_i32_1 = arith.constant 0 : i32
    return %arg0, %c0_i32, %c0_i32_0 : i32, i32, i32
  }
  func.func @transform_1(%arg0: i32, %arg1: i32) -> (i32, i32, i32) {
    %c0_i32 = arith.constant 0 : i32
    %c0_i32_0 = arith.constant 0 : i32
    %c0_i32_1 = arith.constant 0 : i32
    %c0_i32_2 = arith.constant 0 : i32
    return %c0_i32, %c0_i32_0, %c0_i32_1 : i32, i32, i32
  }
  func.func @transform_2(%arg0: i32, %arg1: i32) -> (i32, i32) {
    %c0_i32 = arith.constant 0 : i32
    %c0_i32_0 = arith.constant 0 : i32
    %c0_i32_1 = arith.constant 0 : i32
    return %c0_i32, %c0_i32_0 : i32, i32
  }
  func.func @transform_3(%arg0: i32, %arg1: i32) -> (i32, i32, i32) {
    %c0_i32 = arith.constant 0 : i32
    %c0_i32_0 = arith.constant 0 : i32
    return %arg0, %arg1, %c0_i32 : i32, i32, i32
  }
}

</mosaic_0001>

<llo_original>
// kernel: tpu_custom_call.1
$region0: #{tpu_custom_call.1}
  #allocation0 [shape = 'u32[]', space=smem, size = 0x4, offset = 0x4, fixed_abs, tag = 'smem constant byte address 0x4 - core index']
  #allocation1 [shape = 'u32[144,128]{1,0:T(1,128)}', space=vmem, size = 0x12000, scoped, tag = 'internal scratch']
  %s0 = inlined_call_operand.hbm [shape: f32[2,16,16], index: 0, kind: input, shape index: {}]
  %s1 = inlined_call_operand.hbm [shape: f32[1,16,32], index: 1, kind: input, shape index: {}]
  %s2 = inlined_call_operand.vmem [shape: f32[1,32], index: 2, kind: input, shape index: {}]
  %s3 = inlined_call_operand.hbm [shape: f32[2,16,32], index: 3, kind: output, shape index: {}]
  %s4 = sld [smem:[#allocation0]]
  $region53: #{tpu_custom_call.1} parent=0
    _
  %s6 = ssub.s32 1, %s4
  %s7 = scalar_select 0, %s6, %s4
  $region1: #{tpu_custom_call.1} parent=0
    #allocation2 [shape = 'u8[16384]{0}', space=vmem, size = 0x4000, scoped, tag = 'input window, operand 0']
    #allocation3 [shape = 's32[2]{0}', space=sflag, size = 0x8, scoped, tag = 'scoped memory for tpu_custom_call.1']
    #allocation4 [shape = 's32[2]{0}', space=sflag, size = 0x8, scoped, tag = 'scoped memory for tpu_custom_call.1']
    #allocation5 [shape = 'u8[8192]{0}', space=vmem, size = 0x2000, scoped, tag = 'input window, operand 1, single buffered']
    #allocation6 [shape = 's32[1]{0}', space=sflag, size = 0x4, scoped, tag = 'scoped memory for tpu_custom_call.1']
    #allocation7 [shape = 'u8[16384]{0}', space=vmem, size = 0x4000, scoped, tag = 'output window, operand 0']
    %8 = vsyncpa [#allocation3], 0
    %s9 = scalar_lea.sflag [#allocation3], 1
    %10 = vsyncpa %s9, 0
    %11 = vsyncpa [#allocation6], 0
    %12 = vsyncpa [#allocation4], 0
    %s13 = scalar_lea.sflag [#allocation4], 1
    %14 = vsyncpa %s13, 0
    loop: start=0, step=1, limit=4
    $region2: #{tpu_custom_call.1} parent=1 // loop_pre_header
      _
    $region3: #{tpu_custom_call.1} parent=1 // loop_header
      %s16 = sphi 0, %s20
      %p17 = scmp.ge.s32.totalorder %s16, 4
      %s23 = sphi 0, %s35
      %s24 = sphi 0, %s31
      %s25 = sphi 0, %s23
      %s26 = sphi 0, %s24
      %s27 = sphi 0, %s25
      %s28 = sphi 0, %s26
      %s38 = sphi 0, %s40
      %s41 = sphi 0, %s38
      %s42 = sphi 0, %s41
      %s58 = sphi 0, %s42
      %s62 = sphi 0, %s62
      %s64 = sphi 0, %s62
      %s65 = sphi 0, %s64
      %s79 = sphi 0, %s65
      %s83 = sphi 0, %s83
      %s85 = sphi 0, %s83
      %s86 = sphi 0, %s85
      %s100 = sphi 0, %s86
      %s108 = sphi 0, %s110
      %s111 = sphi 0, %s108
      %s112 = sphi 0, %s111
      %s128 = sphi 0, %s112
    $region4: #{tpu_custom_call.1} parent=1 // loop_header_branch
      %19 = sbr.rel (%p17) target = $region8
    $region5: #{tpu_custom_call.1} parent=1 // loop_body
      %s21 = ssub.s32 %s16, 1
      %s22 = ssub.s32 %s16, 2
      %s29 = sadd.s32 1, %s24
      %p30 = scmp.ge.s32.totalorder %s29, 1
      %s31 = scalar_select %p30, 0, %s29
      %s32 = sadd.s32 1, %s23
      %s33 = scalar_select %p30, %s32, %s23
      %p34 = scmp.ge.s32.totalorder %s33, 2
      %s35 = scalar_select %p34, 0, %s33
      %s36 = ssub.s32 %s23, %s35
      %p37 = scmp.eq.s32.totalorder %s36, 0
      %s39 = sadd.s32 %s38, 1
      %s40 = scalar_select %p37, %s38, %s39
      %p43 = pneg %p37
      %p44 = scmp.eq.s32.totalorder %s16, 1
      %p45 = por %p43, %p44
      %p46 = scmp.ne.s32.totalorder %s38, %s41
      %p47 = scmp.eq.s32.totalorder %s16, 0
      %p48 = por %p46, %p47
      %p49 = scmp.ne.s32.totalorder %s38, %s41
      %p50 = scmp.eq.s32.totalorder %s21, 1
      %p51 = por %p49, %p50
      %p52 = scmp.ne.s32.totalorder %s41, %s42
      %p53 = scmp.eq.s32.totalorder %s21, 0
      %p54 = por %p52, %p53
      %p55 = scmp.ne.s32.totalorder %s41, %s42
      %p56 = scmp.eq.s32.totalorder %s22, 1
      %p57 = por %p55, %p56
      %p59 = scmp.ne.s32.totalorder %s42, %s58
      %p60 = scmp.eq.s32.totalorder %s22, 0
      %p61 = por %p59, %p60
      %s63 = sadd.s32 %s62, 1
      %p66 = scmp.eq.s32.totalorder %s16, 1
      %p67 = scmp.ne.s32.totalorder %s62, %s64
      %p68 = scmp.eq.s32.totalorder %s16, 0
      %p69 = por %p67, %p68
      %p70 = scmp.ne.s32.totalorder %s62, %s64
      %p71 = scmp.eq.s32.totalorder %s21, 1
      %p72 = por %p70, %p71
      %p73 = scmp.ne.s32.totalorder %s64, %s65
      %p74 = scmp.eq.s32.totalorder %s21, 0
      %p75 = por %p73, %p74
      %p76 = scmp.ne.s32.totalorder %s64, %s65
      %p77 = scmp.eq.s32.totalorder %s22, 1
      %p78 = por %p76, %p77
      %p80 = scmp.ne.s32.totalorder %s65, %s79
      %p81 = scmp.eq.s32.totalorder %s22, 0
      %p82 = por %p80, %p81
      %s84 = sadd.s32 %s83, 1
      %p87 = scmp.eq.s32.totalorder %s16, 1
      %p88 = scmp.ne.s32.totalorder %s83, %s85
      %p89 = scmp.eq.s32.totalorder %s16, 0
      %p90 = por %p88, %p89
      %p91 = scmp.ne.s32.totalorder %s83, %s85
      %p92 = scmp.eq.s32.totalorder %s21, 1
      %p93 = por %p91, %p92
      %p94 = scmp.ne.s32.totalorder %s85, %s86
      %p95 = scmp.eq.s32.totalorder %s21, 0
      %p96 = por %p94, %p95
      %p97 = scmp.ne.s32.totalorder %s85, %s86
      %p98 = scmp.eq.s32.totalorder %s22, 1
      %p99 = por %p97, %p98
      %p101 = scmp.ne.s32.totalorder %s86, %s100
      %p102 = scmp.eq.s32.totalorder %s22, 0
      %p103 = por %p101, %p102
      %s104 = ssub.s32 %s23, %s35
      %s105 = ssub.s32 %s24, %s31
      %s106 = sor.u32 %s104, %s105
      %p107 = scmp.eq.s32.totalorder %s106, 0
      %s109 = sadd.s32 %s108, 1
      %s110 = scalar_select %p107, %s108, %s109
      %p113 = pneg %p107
      %p114 = scmp.eq.s32.totalorder %s16, 1
      %p115 = por %p113, %p114
      %p116 = scmp.ne.s32.totalorder %s108, %s111
      %p117 = scmp.eq.s32.totalorder %s16, 0
      %p118 = por %p116, %p117
      %p119 = scmp.ne.s32.totalorder %s108, %s111
      %p120 = scmp.eq.s32.totalorder %s21, 1
      %p121 = por %p119, %p120
      %p122 = scmp.ne.s32.totalorder %s111, %s112
      %p123 = scmp.eq.s32.totalorder %s21, 0
      %p124 = por %p122, %p123
      %p125 = scmp.ne.s32.totalorder %s111, %s112
      %p126 = scmp.eq.s32.totalorder %s22, 1
      %p127 = por %p125, %p126
      %p129 = scmp.ne.s32.totalorder %s112, %s128
      %p130 = scmp.eq.s32.totalorder %s22, 0
      %p131 = por %p129, %p130
      %p132 = scmp.le.s32.totalorder 1, %s16
      %p133 = scmp.lt.s32.totalorder %s16, 3
      %p134 = pnand %p132, %p133
      %p135 = pneg %p134
      // Predicated region
      $region9: #{tpu_custom_call.1} parent=5 // pred_check
        _
      $region10: #{tpu_custom_call.1} parent=5 // pred_check_branch
        %137 = sbr.rel (%p134) target = $region12
      $region11: #{tpu_custom_call.1} parent=5 // pred_region
        %s138 = ssub.s32 %s16, 1
        // Predicated region
        $region13: #{tpu_custom_call.1} parent=11 // pred_check
          %p139 = pneg %p75
        $region14: #{tpu_custom_call.1} parent=11 // pred_check_branch
          %141 = sbr.rel (%p139) target = $region16
        $region15: #{tpu_custom_call.1} parent=11 // pred_region
          %s143 = ssub.s32 256, 256
          %144 = vsyncadd [#allocation6], %s143
          %s145 = sshll.u32 [#allocation5], 4
          %s146 = int_to_ptr.vmem [resolvable:$true] %s145
          %151 = dma.hbm_to_vmem [thread:$0]  %s1, 256, %s146, [#allocation6], 128, 128, 8
        $region16: #{tpu_custom_call.1} parent=11 // pred_fallthru
          _
        // Predicated region
        $region17: #{tpu_custom_call.1} parent=11 // pred_check
          %p152 = pneg %p96
        $region18: #{tpu_custom_call.1} parent=11 // pred_check_branch
          %154 = sbr.rel (%p152) target = $region20
        $region19: #{tpu_custom_call.1} parent=11 // pred_region
          _
        $region20: #{tpu_custom_call.1} parent=11 // pred_fallthru
          _
      $region12: #{tpu_custom_call.1} parent=5 // pred_fallthru
        _
      %p155 = scmp.lt.s32.totalorder %s16, 2
      // Predicated region
      $region21: #{tpu_custom_call.1} parent=5 // pred_check
        %p156 = pneg %p155
      $region22: #{tpu_custom_call.1} parent=5 // pred_check_branch
        %158 = sbr.rel (%p156) target = $region24
      $region23: #{tpu_custom_call.1} parent=5 // pred_region
        // Predicated region
        $region25: #{tpu_custom_call.1} parent=23 // pred_check
          %p159 = pneg %p48
        $region26: #{tpu_custom_call.1} parent=23 // pred_check_branch
          %161 = sbr.rel (%p159) target = $region28
        $region27: #{tpu_custom_call.1} parent=23 // pred_region
          %s162 = sand.u32 %s38, 1
          %s163 = scalar_lea.sflag [#allocation3], %s162
          %s164 = sand.u32 %s38, 1
          %s165 = smul.addr %s164, 16
          %s166 = scalar_lea.vmem [#allocation2], %s165
          %s168 = ssub.s32 256, 256
          %169 = vsyncadd %s163, %s168
          %s170 = smul.addr %s23, 2
          %s171 = smul.addr %s170, 128
          %s172 = scalar_lea.hbm %s0, %s171
          %s173 = sshll.u32 %s166, 4
          %s174 = int_to_ptr.vmem [resolvable:$true] %s173
          %179 = dma.hbm_to_vmem [thread:$0]  %s172, 256, %s174, %s163, 128, 128, 8
        $region28: #{tpu_custom_call.1} parent=23 // pred_fallthru
          _
      $region24: #{tpu_custom_call.1} parent=5 // pred_fallthru
        _
      %p180 = scmp.le.s32.totalorder 1, %s16
      %p181 = scmp.lt.s32.totalorder %s16, 3
      %p182 = pnand %p180, %p181
      %p183 = pneg %p182
      // Predicated region
      $region29: #{tpu_custom_call.1} parent=5 // pred_check
        _
      $region30: #{tpu_custom_call.1} parent=5 // pred_check_branch
        %185 = sbr.rel (%p182) target = $region32
      $region31: #{tpu_custom_call.1} parent=5 // pred_region
        %s186 = ssub.s32 %s16, 1
        %s187 = sand.u32 %s41, 1
        %s188 = scalar_lea.sflag [#allocation3], %s187
        %s189 = sand.u32 %s41, 1
        %s190 = smul.addr %s189, 16
        %s191 = scalar_lea.vmem [#allocation2], %s190
        // Predicated region
        $region33: #{tpu_custom_call.1} parent=31 // pred_check
          %p192 = pneg %p54
        $region34: #{tpu_custom_call.1} parent=31 // pred_check_branch
          %194 = sbr.rel (%p192) target = $region36
        $region35: #{tpu_custom_call.1} parent=31 // pred_region
          %195 = dma.done %s188, 256
        $region36: #{tpu_custom_call.1} parent=31 // pred_fallthru
          _
        // Predicated region
        $region37: #{tpu_custom_call.1} parent=31 // pred_check
          %p196 = pneg %p75
        $region38: #{tpu_custom_call.1} parent=31 // pred_check_branch
          %198 = sbr.rel (%p196) target = $region40
        $region39: #{tpu_custom_call.1} parent=31 // pred_region
          %199 = dma.done [#allocation6], 256
        $region40: #{tpu_custom_call.1} parent=31 // pred_fallthru
          _
        %s200 = sand.u32 %s41, 1
        %s201 = scalar_lea.sflag [#allocation3], %s200
        %s202 = sand.u32 %s41, 1
        %s203 = smul.addr %s202, 16
        %s204 = scalar_lea.vmem [#allocation2], %s203
        %p205 = pneg %p54
        %p206 = pneg %p51
        %p207 = pneg %p75
        %p208 = pneg %p72
        %p209 = pneg %p96
        %p210 = pneg %p93
        %p211 = pneg %p124
        %p212 = pneg %p121
        %s213 = sand.u32 %s111, 1
        %s214 = scalar_lea.sflag [#allocation4], %s213
        %s215 = sand.u32 %s111, 1
        %s216 = smul.addr %s215, 16
        %s217 = scalar_lea.vmem [#allocation7], %s216
        %s218 = smul.u32 2, %s26
        %s219 = smul.u32 %s26, 16
        %s220 = scalar_lea.vmem %s191, %s219 [#allocation2]
        %v221 = vld [vmem:[%s220] sm:$0xff]
        %v222 = vld [vmem:[%s220 + $0x8] sm:$0xff]
        %v223 = vld [vmem:[#allocation5] sm:$0xff]
        %v224 = vld [vmem:[#allocation5 + $0x8] sm:$0xff]
        %v225 = vld [vmem:[%s2] sm:$0x1]
        %v227 = vlaneseq
        %v228 = vshrl.u32 %v227, 7
        %v229 = vsub.s32 0, %v228
        %v230 = vrot.slane %v225, %v229
        %vm232 = vcmask 130048
        %v234 = vsel %vm232, %v221, 0
        %v237 = vsel %vm232, %v222, 0
        %239 = vmatprep.subr.mxu0 0.0
        %240 = vmatpush1.msra.mxu0 %v223
        %241 = vmatprep.subr.mxu0 0.0
        %242 = vmatpush1.msra.mxu0 %v224
        %243 = vmatprep.subr.mxu0 0.0
        %244 = vmatpush1.msra.mxu0 0.0
        %245 = vmatprep.subr.mxu0 0.0
        %246 = vmatpush1.msra.mxu0 0.0
        %247 = vmatprep.subr.mxu0 0.0
        %248 = vmatpush1.msra.mxu0 0.0
        %249 = vmatprep.subr.mxu0 0.0
        %250 = vmatpush1.msra.mxu0 0.0
        %251 = vmatprep.subr.mxu0 0.0
        %252 = vmatpush1.msra.mxu0 0.0
        %253 = vmatprep.subr.mxu0 0.0
        %254 = vmatpush1.msra.mxu0 0.0
        %255 = vmatprep.subr.mxu0 0.0
        %256 = vmatpush1.msra.mxu0 0.0
        %257 = vmatprep.subr.mxu0 0.0
        %258 = vmatpush1.msra.mxu0 0.0
        %259 = vmatprep.subr.mxu0 0.0
        %260 = vmatpush1.msra.mxu0 0.0
        %261 = vmatprep.subr.mxu0 0.0
        %262 = vmatpush1.msra.mxu0 0.0
        %263 = vmatprep.subr.mxu0 0.0
        %264 = vmatpush1.msra.mxu0 0.0
        %265 = vmatprep.subr.mxu0 0.0
        %266 = vmatpush1.msra.mxu0 0.0
        %267 = vmatprep.subr.mxu0 0.0
        %268 = vmatpush1.msra.mxu0 0.0
        %269 = vmatprep.subr.mxu0 0.0
        %270 = vmatpush1.msra.mxu0 0.0
        %271 = vmatprep.subr.mxu0 0.0
        %272 = vmatpush1.msra.mxu0 0.0
        %273 = vmatprep.subr.mxu0 0.0
        %274 = vmatpush1.msra.mxu0 0.0
        %275 = vmatprep.subr.mxu0 0.0
        %276 = vmatpush1.msra.mxu0 0.0
        %277 = vmatprep.subr.mxu0 0.0
        %278 = vmatpush1.msra.mxu0 0.0
        %279 = vmatprep.subr.mxu0 0.0
        %280 = vmatpush1.msra.mxu0 0.0
        %281 = vmatprep.subr.mxu0 0.0
        %282 = vmatpush1.msra.mxu0 0.0
        %283 = vmatprep.subr.mxu0 0.0
        %284 = vmatpush1.msra.mxu0 0.0
        %285 = vmatprep.subr.mxu0 0.0
        %286 = vmatpush1.msra.mxu0 0.0
        %287 = vmatprep.subr.mxu0 0.0
        %288 = vmatpush1.msra.mxu0 0.0
        %289 = vmatprep.subr.mxu0 0.0
        %290 = vmatpush1.msra.mxu0 0.0
        %291 = vmatprep.subr.mxu0 0.0
        %292 = vmatpush1.msra.mxu0 0.0
        %293 = vmatprep.subr.mxu0 0.0
        %294 = vmatpush1.msra.mxu0 0.0
        %295 = vmatprep.subr.mxu0 0.0
        %296 = vmatpush1.msra.mxu0 0.0
        %297 = vmatprep.subr.mxu0 0.0
        %298 = vmatpush1.msra.mxu0 0.0
        %299 = vmatprep.subr.mxu0 0.0
        %300 = vmatpush1.msra.mxu0 0.0
        %301 = vmatprep.subr.mxu0 0.0
        %302 = vmatpush1.msra.mxu0 0.0
        %303 = vmatprep.mubr.f32.mxu0 0.0
        %304 = vmatmul.mubr.f32.gmra.mrb[0].mxu0 %v234
        %v305 = vpop.f32.mrb[0].mxu0
        %v306 = vadd.f32 %v230, %v305
        %v307 = vpop.f32.mrb[0].mxu0
        %308 = vmatprep.mubr.f32.mxu0 0.0
        %309 = vmatmul.mubr.f32.gmra.mrb[0].mxu0 %v237
        %v310 = vpop.f32.mrb[0].mxu0
        %v311 = vadd.f32 %v230, %v310
        %v312 = vpop.f32.mrb[0].mxu0
        %313 = vdwg.mxu0
        %vm314 = vcmask 261120
        %315 = vst.msk [vmem:[%s217] sm:$0xff] %vm314, %v306
        %316 = vst.msk [vmem:[%s217 + $0x8] sm:$0xff] %vm314, %v311
        %s317 = sand.u32 %s111, 1
        %s318 = scalar_lea.sflag [#allocation4], %s317
        %s319 = sand.u32 %s111, 1
        %s320 = smul.addr %s319, 16
        %s321 = scalar_lea.vmem [#allocation7], %s320
        // Predicated region
        $region41: #{tpu_custom_call.1} parent=31 // pred_check
          %p322 = pneg %p121
        $region42: #{tpu_custom_call.1} parent=31 // pred_check_branch
          %324 = sbr.rel (%p322) target = $region44
        $region43: #{tpu_custom_call.1} parent=31 // pred_region
          %s325 = smul.u32 2, %s26
          %s327 = ssub.s32 256, 256
          %328 = vsyncadd %s318, %s327
          %s329 = smul.addr %s25, 2
          %s330 = sadd.s32 %s325, %s329
          %s331 = smul.addr %s330, 128
          %s332 = scalar_lea.hbm %s3, %s331
          %s333 = sshll.u32 %s321, 4
          %s334 = int_to_ptr.vmem [resolvable:$true] %s333
          %339 = dma.vmem_to_hbm [thread:$0]  %s334, 256, %s332, %s318, 128, 128, 8
        $region44: #{tpu_custom_call.1} parent=31 // pred_fallthru
          _
      $region32: #{tpu_custom_call.1} parent=5 // pred_fallthru
        _
      %p340 = scmp.le.s32.totalorder 2, %s16
      // Predicated region
      $region45: #{tpu_custom_call.1} parent=5 // pred_check
        %p341 = pneg %p340
      $region46: #{tpu_custom_call.1} parent=5 // pred_check_branch
        %343 = sbr.rel (%p341) target = $region48
      $region47: #{tpu_custom_call.1} parent=5 // pred_region
        %s344 = ssub.s32 %s16, 2
        // Predicated region
        $region49: #{tpu_custom_call.1} parent=47 // pred_check
          %p345 = pneg %p127
        $region50: #{tpu_custom_call.1} parent=47 // pred_check_branch
          %347 = sbr.rel (%p345) target = $region52
        $region51: #{tpu_custom_call.1} parent=47 // pred_region
          %s348 = sand.u32 %s112, 1
          %s349 = scalar_lea.sflag [#allocation4], %s348
          %s350 = sand.u32 %s112, 1
          %s351 = smul.addr %s350, 16
          %s352 = scalar_lea.vmem [#allocation7], %s351
          %353 = dma.done %s349, 256
        $region52: #{tpu_custom_call.1} parent=47 // pred_fallthru
          _
      $region48: #{tpu_custom_call.1} parent=5 // pred_fallthru
        _
    $region6: #{tpu_custom_call.1} parent=1 // loop_footer
      %s20 = sadd.s32 1, %s16
    $region7: #{tpu_custom_call.1} parent=1 // loop_footer_branch
      %15 = sbr.rel target = $region3
    $region8: #{tpu_custom_call.1} parent=1 // loop_exit
      _
    %354 = vsyncpa [#allocation3], 1
    %s355 = scalar_lea.sflag [#allocation3], 1
    %356 = vsyncpa %s355, 1
    %357 = vsyncpa [#allocation6], 1
    %358 = vsyncpa [#allocation4], 1
    %s359 = scalar_lea.sflag [#allocation4], 1
    %360 = vsyncpa %s359, 1

</llo_original>
